<compile_context>
chip_gen: v7x
topology: tpu7x:2x2x1
jax: 0.10.0
libtpu: 0.0.40
codegen_flags: <defaults>
</compile_context>

<pallas_src>
from functools import partial

import jax
import jax.numpy as jnp
from jax.experimental import pallas as pl
from jax.experimental.pallas import tpu as pltpu

BN_EPS = 1e-5
LANES = 128
HALF = 64  # lane offset of the second packed sample


def _cdiv(a, b):
    return (a + b - 1) // b


def _round_up(x, m):
    return ((x + m - 1) // m) * m


# ----------------------------------------------------------------------------
# Kernel
# ----------------------------------------------------------------------------
def _make_kernel(pad_k1):
    # Static row offsets inside the bf16 weight slab.
    o_w2 = pad_k1
    o_w3 = pad_k1 + LANES
    o_w4 = pad_k1 + 2 * LANES

    def kernel(x_ref, w_ref, m_ref, out_ref):
        # x tile: [TB, pad_k1] f32 holding 2 samples per row -> cast to bf16 in-kernel
        # (cheaper than converting in the wrapper, which would add HBM traffic).
        xb = x_ref[...].astype(jnp.bfloat16)

        # Block-diagonal bf16 weights (all slices are 16-row aligned -> no relayout).
        w1 = w_ref[pl.ds(0, pad_k1), :]      # [pad_k1, 128]
        w2 = w_ref[pl.ds(o_w2, LANES), :]    # [128, 128]
        w3 = w_ref[pl.ds(o_w3, LANES), :]    # [128, 128]
        w4 = w_ref[pl.ds(o_w4, LANES), :]    # [128, 128]

        # f32 biases / fc5 weights, duplicated per 64-lane half.
        b1 = m_ref[pl.ds(0, 1), :]
        b2 = m_ref[pl.ds(1, 1), :]
        b3 = m_ref[pl.ds(2, 1), :]
        b4 = m_ref[pl.ds(3, 1), :]
        w5a = m_ref[pl.ds(4, 1), :]          # fc5 weights, sample-0 lanes (0:32)
        w5b = m_ref[pl.ds(5, 1), :]          # fc5 weights, sample-1 lanes (64:96)
        b5 = m_ref[pl.ds(6, 1), pl.ds(0, 1)] # [1, 1]

        # fc1..fc4 (BN folded): bf16 MXU matmul, f32 accumulation, f32 bias + ReLU.
        h = jnp.maximum(jnp.dot(xb, w1, preferred_element_type=jnp.float32) + b1, 0.0)
        h = jnp.maximum(jnp.dot(h.astype(jnp.bfloat16), w2,
                                preferred_element_type=jnp.float32) + b2, 0.0)
        h = jnp.maximum(jnp.dot(h.astype(jnp.bfloat16), w3,
                                preferred_element_type=jnp.float32) + b3, 0.0)
        h = jnp.maximum(jnp.dot(h.astype(jnp.bfloat16), w4,
                                preferred_element_type=jnp.float32) + b4, 0.0)

        # fc5 (32 -> 1) per packed sample: VPU multiply + XLU lane reduction.
        s0 = jnp.sum(h * w5a, axis=-1, keepdims=True)   # [TB, 1]  sample 2i
        s1 = jnp.sum(h * w5b, axis=-1, keepdims=True)   # [TB, 1]  sample 2i+1
        lane = jax.lax.broadcasted_iota(jnp.int32, (s0.shape[0], 2), 1)
        out = jnp.where(lane == 0, s0, s1) + b5          # [TB, 2]
        out_ref[...] = out.astype(out_ref.dtype)

    return kernel


# ----------------------------------------------------------------------------
# Wrapper
# ----------------------------------------------------------------------------
def _elo_forward(x, wslab, misc, *, block_rows=4096):
    """x: [B, input_size]. wslab/misc: packed params from fold_and_pack()."""
    B, in_dim = x.shape
    pad_k1 = _round_up(2 * in_dim, 16)
    assert wslab.shape == (pad_k1 + 3 * LANES, LANES) and wslab.dtype == jnp.bfloat16
    assert misc.shape == (8, LANES) and misc.dtype == jnp.float32

    # Packed-row tiling. Ensure >= 2 grid steps when the batch is big enough so the
    # "parallel" axis can feed both v7x TensorCores; otherwise one tile is fine.
    rows = _cdiv(B, 2)
    min_steps = 2 if rows >= 16 else 1
    nsteps = max(_cdiv(rows, block_rows), min_steps)
    tb = max(8, _round_up(_cdiv(rows, nsteps), 8))
    rows_padded = _round_up(rows, tb)
    Bp = rows_padded * 2

    xp = x.astype(jnp.float32)
    if Bp != B:
        xp = jnp.pad(xp, ((0, Bp - B), (0, 0)))
    x_packed = xp.reshape(rows_padded, 2 * in_dim)       # 2 samples per row
    if pad_k1 != 2 * in_dim:
        x_packed = jnp.pad(x_packed, ((0, 0), (0, pad_k1 - 2 * in_dim)))

    grid = (rows_padded // tb,)
    kernel = _make_kernel(pad_k1)

    # Derive the scoped-VMEM limit from the tile size (double-buffered x/out tiles,
    # resident parameter slabs, and a generous budget for live f32/bf16 activations).
    act_bytes = tb * LANES * 4
    est = (2 * tb * pad_k1 * 4 + 2 * tb * 2 * 4
           + 2 * int(wslab.size) * 2 + 2 * int(misc.size) * 4
           + 8 * act_bytes)
    vmem_limit = int(min(max(est * 1.25, 16 * 2**20), 96 * 2**20))

    out = pl.pallas_call(
        kernel,
        out_shape=jax.ShapeDtypeStruct((rows_padded, 2), jnp.float32),
        grid_spec=pltpu.PrefetchScalarGridSpec(
            num_scalar_prefetch=0,
            grid=grid,
            in_specs=[
                # x: tiled over packed rows, double-buffered by the pipeline.
                pl.BlockSpec((tb, pad_k1), lambda i: (i, 0)),
                # bf16 weight slab: constant index_map -> resident, DMA'd once.
                pl.BlockSpec(wslab.shape, lambda i: (0, 0)),
                # f32 bias / fc5 slab: constant index_map -> resident.
                pl.BlockSpec(misc.shape, lambda i: (0, 0)),
            ],
            out_specs=pl.BlockSpec((tb, 2), lambda i: (i, 0)),
        ),
        compiler_params=pltpu.CompilerParams(
            dimension_semantics=("parallel",),   # shard batch tiles across TCs (v7x)
            vmem_limit_bytes=vmem_limit,
        ),
    )(x_packed, wslab, misc)

    # Un-pack [rows, 2] -> [B, 1] (row-major reshape restores the sample order).
    return out.reshape(Bp, 1)[:B]


elo_forward = jax.jit(_elo_forward, static_argnames=("block_rows",))


# ----------------------------------------------------------------------------
# Parameter handling (raw params ~ PyTorch EloModel; fold + pack for the kernel)
# ----------------------------------------------------------------------------
def init_params(key, input_size):
    """Raw parameters matching EloModel.__init__ (W stored [in, out])."""
    dims = [(input_size, 64), (64, 64), (64, 32), (32, 32), (32, 1)]
    params = []
    keys = jax.random.split(key, 32)
    ki = 0
    for li, (fan_in, fan_out) in enumerate(dims):
        bound = 1.0 / float(fan_in) ** 0.5
        w = jax.random.uniform(keys[ki], (fan_in, fan_out), jnp.float32, -bound, bound); ki += 1
        b = jax.random.uniform(keys[ki], (fan_out,), jnp.float32, -bound, bound); ki += 1
        params.extend([w, b])
        if li < 4:  # BatchNorm1d after fc1..fc4
            gamma = jnp.ones((fan_out,), jnp.float32)
            beta = jnp.zeros((fan_out,), jnp.float32)
            rmean = jax.random.normal(keys[ki], (fan_out,), jnp.float32) * 0.1; ki += 1
            rvar = jnp.abs(jax.random.normal(keys[ki], (fan_out,), jnp.float32)) * 0.1 + 1.0; ki += 1
            params.extend([gamma, beta, rmean, rvar])
    return tuple(params)


def fold_params(params):
    """Fold eval-mode BN into the linears: W' = W*s, b' = (b-mean)*s + beta."""
    p = list(params)
    folded = []
    for li in range(5):
        w, b = p.pop(0), p.pop(0)
        if li < 4:
            g, be, m, v = p.pop(0), p.pop(0), p.pop(0), p.pop(0)
            s = g * jax.lax.rsqrt(v + BN_EPS)
            w = w * s[None, :]
            b = (b - m) * s + be
        folded.append((w, b))
    return folded


def fold_and_pack(params, input_size):
    """Pack folded params: bf16 block-diagonal weight slab + tiny f32 bias slab."""
    (w1, b1), (w2, b2), (w3, b3), (w4, b4), (w5, b5) = fold_params(params)
    pad_k1 = _round_up(2 * input_size, 16)
    rows_w = pad_k1 + 3 * LANES

    # Block-diagonal weights: sample 0 -> lanes [0:64), sample 1 -> lanes [64:128).
    wslab = jnp.zeros((rows_w, LANES), jnp.float32)
    wslab = wslab.at[0:input_size, 0:64].set(w1)
    wslab = wslab.at[input_size:2 * input_size, HALF:HALF + 64].set(w1)
    o2 = pad_k1
    wslab = wslab.at[o2:o2 + 64, 0:64].set(w2)
    wslab = wslab.at[o2 + 64:o2 + 128, HALF:HALF + 64].set(w2)
    o3 = pad_k1 + LANES
    wslab = wslab.at[o3:o3 + 64, 0:32].set(w3)
    wslab = wslab.at[o3 + 64:o3 + 128, HALF:HALF + 32].set(w3)
    o4 = pad_k1 + 2 * LANES
    wslab = wslab.at[o4:o4 + 32, 0:32].set(w4)
    wslab = wslab.at[o4 + 64:o4 + 96, HALF:HALF + 32].set(w4)
    wslab = wslab.astype(jnp.bfloat16)

    # f32 biases / fc5 weights, duplicated per 64-lane half.
    misc = jnp.zeros((8, LANES), jnp.float32)
    misc = misc.at[0, 0:64].set(b1);  misc = misc.at[0, HALF:HALF + 64].set(b1)
    misc = misc.at[1, 0:64].set(b2);  misc = misc.at[1, HALF:HALF + 64].set(b2)
    misc = misc.at[2, 0:32].set(b3);  misc = misc.at[2, HALF:HALF + 32].set(b3)
    misc = misc.at[3, 0:32].set(b4);  misc = misc.at[3, HALF:HALF + 32].set(b4)
    misc = misc.at[4, 0:32].set(w5[:, 0])                # fc5 weights, sample-0 half
    misc = misc.at[5, HALF:HALF + 32].set(w5[:, 0])      # fc5 weights, sample-1 half
    misc = misc.at[6, 0].set(b5[0])                      # fc5 bias scalar
    return wslab, misc


# ----------------------------------------------------------------------------
# References
# ----------------------------------------------------------------------------
def reference_forward(x, params):
    """Pure f32 reference on RAW (unfolded) params — eval-mode PyTorch semantics."""
    p = list(params)
    h = x
    for li in range(5):
        w, b = p.pop(0), p.pop(0)
        h = h @ w + b[None, :]
        if li < 4:
            g, be, m, v = p.pop(0), p.pop(0), p.pop(0), p.pop(0)
            h = jnp.maximum(
                (h - m[None, :]) * jax.lax.rsqrt(v[None, :] + BN_EPS) * g[None, :] + be[None, :],
                0.0,
            )
    return h


def reference_kernel_numerics(x, params):
    """Reference emulating the kernel's numerics: folded BN, bf16 matmul operands,
    f32 accumulation, f32 bias/ReLU, VPU-style fc5 reduction."""
    folded = fold_params(params)
    h = x.astype(jnp.float32)
    for (w, b) in folded[:4]:
        h = jnp.dot(h.astype(jnp.bfloat16), w.astype(jnp.bfloat16),
                    preferred_element_type=jnp.float32) + b[None, :]
        h = jnp.maximum(h, 0.0)
    w5, b5 = folded[4]
    return jnp.sum(h * w5[:, 0][None, :], axis=-1, keepdims=True) + b5[0]


if __name__ == "__main__":
    key = jax.random.PRNGKey(0)
    k_x1, k_x2, k_p = jax.random.split(key, 3)

    input_size = 32
    params = init_params(k_p, input_size)
    wslab, misc = fold_and_pack(params, input_size)

    # Small even batch (single grid step).
    x1 = jax.random.normal(k_x1, (8, input_size), jnp.float32)
    out1 = jax.block_until_ready(elo_forward(x1, wslab, misc))
    assert out1.shape == (8, 1)
    assert jnp.allclose(out1, reference_kernel_numerics(x1, params), atol=1e-3, rtol=1e-3), \
        "mismatch vs bf16-numerics reference (small batch)"
    assert jnp.allclose(out1, reference_forward(x1, params), atol=3e-2, rtol=3e-2), \
        "mismatch vs f32 eval reference (small batch)"

    # Odd batch with padding and a 2-step grid (exercises packing + multi-tile path).
    x2 = jax.random.normal(k_x2, (259, input_size), jnp.float32)
    out2 = jax.block_until_ready(elo_forward(x2, wslab, misc))
    assert out2.shape == (259, 1)
    assert jnp.allclose(out2, reference_kernel_numerics(x2, params), atol=1e-3, rtol=1e-3), \
        "mismatch vs bf16-numerics reference (odd batch)"
    assert jnp.allclose(out2, reference_forward(x2, params), atol=3e-2, rtol=3e-2), \
        "mismatch vs f32 eval reference (odd batch)"

    print("KERNEL_OK")
</pallas_src>

<mosaic_0001>
module attributes {stable_mosaic.version = 11 : i64} {
  func.func @kernel(%arg0: i32, %arg1: memref<8x64xf32, #tpu.memory_space<vmem>>, %arg2: memref<448x128xbf16, #tpu.memory_space<vmem>>, %arg3: memref<8x128xf32, #tpu.memory_space<vmem>>, %arg4: memref<8x2xf32, #tpu.memory_space<vmem>>) attributes {dimension_semantics = [#tpu.dimension_semantics<parallel>], iteration_bounds = array<i64: 1>, scalar_prefetch = 0 : i64, scratch_operands = 0 : i64, tpu.core_type = #tpu.core_type<tc>, window_params = [{transform_indices = @transform_0, window_bounds = array<i64: 8, 64>}, {pipeline_mode = #tpu.pipeline_mode<synchronous>, transform_indices = @transform_1, window_bounds = array<i64: 448, 128>}, {pipeline_mode = #tpu.pipeline_mode<synchronous>, transform_indices = @transform_2, window_bounds = array<i64: 8, 128>}, {transform_indices = @transform_3, window_bounds = array<i64: 8, 2>}]} {
    %c0 = arith.constant 0 : index
    %c0_0 = arith.constant 0 : index
    %0 = vector.load %arg1[%c0, %c0_0] : memref<8x64xf32, #tpu.memory_space<vmem>>, vector<8x64xf32>
    %1 = arith.truncf %0 : vector<8x64xf32> to vector<8x64xbf16>
    %c0_1 = arith.constant 0 : index
    %c0_2 = arith.constant 0 : index
    %2 = vector.load %arg2[%c0_1, %c0_2] : memref<448x128xbf16, #tpu.memory_space<vmem>>, vector<64x128xbf16>
    %c64 = arith.constant 64 : index
    %c0_3 = arith.constant 0 : index
    %3 = vector.load %arg2[%c64, %c0_3] : memref<448x128xbf16, #tpu.memory_space<vmem>>, vector<128x128xbf16>
    %c192 = arith.constant 192 : index
    %c0_4 = arith.constant 0 : index
    %4 = vector.load %arg2[%c192, %c0_4] : memref<448x128xbf16, #tpu.memory_space<vmem>>, vector<128x128xbf16>
    %c320 = arith.constant 320 : index
    %c0_5 = arith.constant 0 : index
    %5 = vector.load %arg2[%c320, %c0_5] : memref<448x128xbf16, #tpu.memory_space<vmem>>, vector<128x128xbf16>
    %c0_6 = arith.constant 0 : index
    %c0_7 = arith.constant 0 : index
    %6 = vector.load %arg3[%c0_6, %c0_7] : memref<8x128xf32, #tpu.memory_space<vmem>>, vector<1x128xf32>
    %c1 = arith.constant 1 : index
    %c0_8 = arith.constant 0 : index
    %7 = vector.load %arg3[%c1, %c0_8] : memref<8x128xf32, #tpu.memory_space<vmem>>, vector<1x128xf32>
    %c2 = arith.constant 2 : index
    %c0_9 = arith.constant 0 : index
    %8 = vector.load %arg3[%c2, %c0_9] : memref<8x128xf32, #tpu.memory_space<vmem>>, vector<1x128xf32>
    %c3 = arith.constant 3 : index
    %c0_10 = arith.constant 0 : index
    %9 = vector.load %arg3[%c3, %c0_10] : memref<8x128xf32, #tpu.memory_space<vmem>>, vector<1x128xf32>
    %c4 = arith.constant 4 : index
    %c0_11 = arith.constant 0 : index
    %10 = vector.load %arg3[%c4, %c0_11] : memref<8x128xf32, #tpu.memory_space<vmem>>, vector<1x128xf32>
    %c5 = arith.constant 5 : index
    %c0_12 = arith.constant 0 : index
    %11 = vector.load %arg3[%c5, %c0_12] : memref<8x128xf32, #tpu.memory_space<vmem>>, vector<1x128xf32>
    %c6 = arith.constant 6 : index
    %c0_13 = arith.constant 0 : index
    %12 = vector.load %arg3[%c6, %c0_13] : memref<8x128xf32, #tpu.memory_space<vmem>>, vector<1x1xf32>
    %cst = arith.constant dense<0.000000e+00> : vector<8x128xf32>
    %13 = tpu.matmul %1, %2, %cst {dimension_numbers = #tpu.dot_dimension_numbers<[1], [0], [0], [1], [0, 0, 1, 1], [], []>} : vector<8x64xbf16>, vector<64x128xbf16>, vector<8x128xf32> -> vector<8x128xf32>
    %14 = vector.broadcast %6 : vector<1x128xf32> to vector<8x128xf32>
    %15 = arith.addf %13, %14 : vector<8x128xf32>
    %cst_14 = arith.constant 0.000000e+00 : f32
    %16 = vector.broadcast %cst_14 : f32 to vector<8x128xf32>
    %17 = arith.maximumf %15, %16 : vector<8x128xf32>
    %18 = arith.truncf %17 : vector<8x128xf32> to vector<8x128xbf16>
    %cst_15 = arith.constant dense<0.000000e+00> : vector<8x128xf32>
    %19 = tpu.matmul %18, %3, %cst_15 {dimension_numbers = #tpu.dot_dimension_numbers<[1], [0], [0], [1], [0, 0, 1, 1], [], []>} : vector<8x128xbf16>, vector<128x128xbf16>, vector<8x128xf32> -> vector<8x128xf32>
    %20 = vector.broadcast %7 : vector<1x128xf32> to vector<8x128xf32>
    %21 = arith.addf %19, %20 : vector<8x128xf32>
    %cst_16 = arith.constant 0.000000e+00 : f32
    %22 = vector.broadcast %cst_16 : f32 to vector<8x128xf32>
    %23 = arith.maximumf %21, %22 : vector<8x128xf32>
    %24 = arith.truncf %23 : vector<8x128xf32> to vector<8x128xbf16>
    %cst_17 = arith.constant dense<0.000000e+00> : vector<8x128xf32>
    %25 = tpu.matmul %24, %4, %cst_17 {dimension_numbers = #tpu.dot_dimension_numbers<[1], [0], [0], [1], [0, 0, 1, 1], [], []>} : vector<8x128xbf16>, vector<128x128xbf16>, vector<8x128xf32> -> vector<8x128xf32>
    %26 = vector.broadcast %8 : vector<1x128xf32> to vector<8x128xf32>
    %27 = arith.addf %25, %26 : vector<8x128xf32>
    %cst_18 = arith.constant 0.000000e+00 : f32
    %28 = vector.broadcast %cst_18 : f32 to vector<8x128xf32>
    %29 = arith.maximumf %27, %28 : vector<8x128xf32>
    %30 = arith.truncf %29 : vector<8x128xf32> to vector<8x128xbf16>
    %cst_19 = arith.constant dense<0.000000e+00> : vector<8x128xf32>
    %31 = tpu.matmul %30, %5, %cst_19 {dimension_numbers = #tpu.dot_dimension_numbers<[1], [0], [0], [1], [0, 0, 1, 1], [], []>} : vector<8x128xbf16>, vector<128x128xbf16>, vector<8x128xf32> -> vector<8x128xf32>
    %32 = vector.broadcast %9 : vector<1x128xf32> to vector<8x128xf32>
    %33 = arith.addf %31, %32 : vector<8x128xf32>
    %cst_20 = arith.constant 0.000000e+00 : f32
    %34 = vector.broadcast %cst_20 : f32 to vector<8x128xf32>
    %35 = arith.maximumf %33, %34 : vector<8x128xf32>
    %36 = vector.broadcast %10 : vector<1x128xf32> to vector<8x128xf32>
    %37 = arith.mulf %35, %36 : vector<8x128xf32>
    %cst_21 = arith.constant dense<0.000000e+00> : vector<8xf32>
    %38 = vector.multi_reduction <add>, %37, %cst_21 [1] : vector<8x128xf32> to vector<8xf32>
    %39 = vector.shape_cast %38 : vector<8xf32> to vector<8x1xf32>
    %40 = vector.broadcast %11 : vector<1x128xf32> to vector<8x128xf32>
    %41 = arith.mulf %35, %40 : vector<8x128xf32>
    %cst_22 = arith.constant dense<0.000000e+00> : vector<8xf32>
    %42 = vector.multi_reduction <add>, %41, %cst_22 [1] : vector<8x128xf32> to vector<8xf32>
    %43 = vector.shape_cast %42 : vector<8xf32> to vector<8x1xf32>
    %44 = tpu.iota {dimensions = array<i32: 1>} : vector<8x2xi32>
    %c0_i32 = arith.constant 0 : i32
    %45 = vector.broadcast %c0_i32 : i32 to vector<8x2xi32>
    %46 = arith.cmpi eq, %44, %45 : vector<8x2xi32>
    %47 = vector.shape_cast %39 : vector<8x1xf32> to vector<8x1xf32>
    %48 = vector.broadcast %47 : vector<8x1xf32> to vector<8x2xf32>
    %49 = vector.shape_cast %43 : vector<8x1xf32> to vector<8x1xf32>
    %50 = vector.broadcast %49 : vector<8x1xf32> to vector<8x2xf32>
    %51 = arith.select %46, %48, %50 : vector<8x2xi1>, vector<8x2xf32>
    %52 = vector.broadcast %12 : vector<1x1xf32> to vector<8x2xf32>
    %53 = arith.addf %51, %52 : vector<8x2xf32>
    %c0_23 = arith.constant 0 : index
    %c0_24 = arith.constant 0 : index
    %54 = vector.load %arg4[%c0_23, %c0_24] : memref<8x2xf32, #tpu.memory_space<vmem>>, vector<8x2xf32>
    tpu.vector_store %arg4[%c0_23, %c0_24], %53 {strides = array<i32>} : memref<8x2xf32, #tpu.memory_space<vmem>>, vector<8x2xf32>,
    return
  }
  func.func @transform_0(%arg0: i32) -> (i32, i32) {
    %c0_i32 = arith.constant 0 : i32
    %c0_i32_0 = arith.constant 0 : i32
    return %arg0, %c0_i32 : i32, i32
  }
  func.func @transform_1(%arg0: i32) -> (i32, i32) {
    %c0_i32 = arith.constant 0 : i32
    %c0_i32_0 = arith.constant 0 : i32
    %c0_i32_1 = arith.constant 0 : i32
    return %c0_i32, %c0_i32_0 : i32, i32
  }
  func.func @transform_2(%arg0: i32) -> (i32, i32) {
    %c0_i32 = arith.constant 0 : i32
    %c0_i32_0 = arith.constant 0 : i32
    %c0_i32_1 = arith.constant 0 : i32
    return %c0_i32, %c0_i32_0 : i32, i32
  }
  func.func @transform_3(%arg0: i32) -> (i32, i32) {
    %c0_i32 = arith.constant 0 : i32
    %c0_i32_0 = arith.constant 0 : i32
    return %arg0, %c0_i32 : i32, i32
  }
}

</mosaic_0001>

<llo_original>
// kernel: _elo_forward.1
$region0: #{_elo_forward.1}
  #allocation0 [shape = 'u32[]', space=smem, size = 0x4, offset = 0x4, fixed_abs, tag = 'smem constant byte address 0x4 - core index']
  #allocation1 [shape = 'u32[144,128]{1,0:T(1,128)}', space=vmem, size = 0x12000, scoped, tag = 'internal scratch']
  %s0 = inlined_call_operand.vmem [shape: f32[8,64], index: 0, kind: input, shape index: {}]
  %s1 = inlined_call_operand.hbm [shape: bf16[448,128], index: 1, kind: input, shape index: {}]
  %s2 = inlined_call_operand.vmem [shape: f32[8,128], index: 2, kind: input, shape index: {}]
  %s3 = inlined_call_operand.vmem [shape: f32[8,2], index: 3, kind: output, shape index: {}]
  %s4 = sld [smem:[#allocation0]]
  $region26: #{_elo_forward.1} parent=0
    _
  %s6 = ssub.s32 1, %s4
  %s7 = scalar_select 0, %s6, %s4
  $region1: #{_elo_forward.1} parent=0
    #allocation2 [shape = 'u8[114688]{0}', space=vmem, size = 0x1c000, scoped, tag = 'input window, operand 1, single buffered']
    #allocation3 [shape = 's32[1]{0}', space=sflag, size = 0x4, scoped, tag = 'scoped memory for _elo_forward.1']
    %8 = vsyncpa [#allocation3], 0
    // Predicated region
    $region2: #{_elo_forward.1} parent=1 // pred_check
      _
    $region3: #{_elo_forward.1} parent=1 // pred_check_branch
      %10 = sbr.rel (0) target = $region5
    $region4: #{_elo_forward.1} parent=1 // pred_region
      _
    $region5: #{_elo_forward.1} parent=1 // pred_fallthru
      _
    // Predicated region
    $region6: #{_elo_forward.1} parent=1 // pred_check
      _
    $region7: #{_elo_forward.1} parent=1 // pred_check_branch
      %12 = sbr.rel (0) target = $region9
    $region8: #{_elo_forward.1} parent=1 // pred_region
      %s14 = ssub.s32 3584, 3584
      %15 = vsyncadd [#allocation3], %s14
      %s16 = sshll.u32 [#allocation2], 4
      %s17 = int_to_ptr.vmem [resolvable:$true] %s16
      %22 = dma.hbm_to_vmem [thread:$0]  %s1, 3584, %s17, [#allocation3], 64, 64, 4
    $region9: #{_elo_forward.1} parent=1 // pred_fallthru
      _
    // Predicated region
    $region10: #{_elo_forward.1} parent=1 // pred_check
      _
    $region11: #{_elo_forward.1} parent=1 // pred_check_branch
      %24 = sbr.rel (0) target = $region13
    $region12: #{_elo_forward.1} parent=1 // pred_region
      _
    $region13: #{_elo_forward.1} parent=1 // pred_fallthru
      _
    // Predicated region
    $region14: #{_elo_forward.1} parent=1 // pred_check
      _
    $region15: #{_elo_forward.1} parent=1 // pred_check_branch
      %26 = sbr.rel (0) target = $region17
    $region16: #{_elo_forward.1} parent=1 // pred_region
      %27 = dma.done [#allocation3], 3584
    $region17: #{_elo_forward.1} parent=1 // pred_fallthru
      _
    %v29 = vld [vmem:[%s0] sm:$0xff]
    %v30 = vpack.c.bf16 %v29, %v29
    %v31 = vld [vmem:[#allocation2] sm:$0xf]
    %v32 = vld [vmem:[#allocation2 + $0x4] sm:$0xf]
    %v33 = vld [vmem:[#allocation2 + $0x8] sm:$0xf]
    %v34 = vld [vmem:[#allocation2 + $0xc] sm:$0xf]
    %v35 = vld [vmem:[#allocation2 + $0x10] sm:$0xf]
    %v36 = vld [vmem:[#allocation2 + $0x14] sm:$0xf]
    %v37 = vld [vmem:[#allocation2 + $0x18] sm:$0xf]
    %v38 = vld [vmem:[#allocation2 + $0x1c] sm:$0xf]
    %v39 = vld [vmem:[#allocation2 + $0x20] sm:$0xf]
    %v40 = vld [vmem:[#allocation2 + $0x24] sm:$0xf]
    %v41 = vld [vmem:[#allocation2 + $0x28] sm:$0xf]
    %v42 = vld [vmem:[#allocation2 + $0x2c] sm:$0xf]
    %v43 = vld [vmem:[#allocation2 + $0x30] sm:$0xf]
    %v44 = vld [vmem:[#allocation2 + $0x34] sm:$0xf]
    %v45 = vld [vmem:[#allocation2 + $0x38] sm:$0xf]
    %v46 = vld [vmem:[#allocation2 + $0x3c] sm:$0xf]
    %v47 = vld [vmem:[#allocation2 + $0x40] sm:$0xf]
    %v48 = vld [vmem:[#allocation2 + $0x44] sm:$0xf]
    %v49 = vld [vmem:[#allocation2 + $0x48] sm:$0xf]
    %v50 = vld [vmem:[#allocation2 + $0x4c] sm:$0xf]
    %v51 = vld [vmem:[#allocation2 + $0x50] sm:$0xf]
    %v52 = vld [vmem:[#allocation2 + $0x54] sm:$0xf]
    %v53 = vld [vmem:[#allocation2 + $0x58] sm:$0xf]
    %v54 = vld [vmem:[#allocation2 + $0x5c] sm:$0xf]
    %v55 = vld [vmem:[#allocation2 + $0x60] sm:$0xf]
    %v56 = vld [vmem:[#allocation2 + $0x64] sm:$0xf]
    %v57 = vld [vmem:[#allocation2 + $0x68] sm:$0xf]
    %v58 = vld [vmem:[#allocation2 + $0x6c] sm:$0xf]
    %v59 = vld [vmem:[#allocation2 + $0x70] sm:$0xf]
    %v60 = vld [vmem:[#allocation2 + $0x74] sm:$0xf]
    %v61 = vld [vmem:[#allocation2 + $0x78] sm:$0xf]
    %v62 = vld [vmem:[#allocation2 + $0x7c] sm:$0xf]
    %v63 = vld [vmem:[#allocation2 + $0x80] sm:$0xf]
    %v64 = vld [vmem:[#allocation2 + $0x84] sm:$0xf]
    %v65 = vld [vmem:[#allocation2 + $0x88] sm:$0xf]
    %v66 = vld [vmem:[#allocation2 + $0x8c] sm:$0xf]
    %v67 = vld [vmem:[#allocation2 + $0x90] sm:$0xf]
    %v68 = vld [vmem:[#allocation2 + $0x94] sm:$0xf]
    %v69 = vld [vmem:[#allocation2 + $0x98] sm:$0xf]
    %v70 = vld [vmem:[#allocation2 + $0x9c] sm:$0xf]
    %v71 = vld [vmem:[#allocation2 + $0xa0] sm:$0xf]
    %v72 = vld [vmem:[#allocation2 + $0xa4] sm:$0xf]
    %v73 = vld [vmem:[#allocation2 + $0xa8] sm:$0xf]
    %v74 = vld [vmem:[#allocation2 + $0xac] sm:$0xf]
    %v75 = vld [vmem:[#allocation2 + $0xb0] sm:$0xf]
    %v76 = vld [vmem:[#allocation2 + $0xb4] sm:$0xf]
    %v77 = vld [vmem:[#allocation2 + $0xb8] sm:$0xf]
    %v78 = vld [vmem:[#allocation2 + $0xbc] sm:$0xf]
    %v79 = vld [vmem:[#allocation2 + $0xc0] sm:$0xf]
    %v80 = vld [vmem:[#allocation2 + $0xc4] sm:$0xf]
    %v81 = vld [vmem:[#allocation2 + $0xc8] sm:$0xf]
    %v82 = vld [vmem:[#allocation2 + $0xcc] sm:$0xf]
    %v83 = vld [vmem:[#allocation2 + $0xd0] sm:$0xf]
    %v84 = vld [vmem:[#allocation2 + $0xd4] sm:$0xf]
    %v85 = vld [vmem:[#allocation2 + $0xd8] sm:$0xf]
    %v86 = vld [vmem:[#allocation2 + $0xdc] sm:$0xf]
    %v87 = vld [vmem:[%s2] sm:$0x1]
    %v88 = vld [vmem:[%s2 + $0x1] sm:$0x1]
    %v89 = vld [vmem:[%s2 + $0x2] sm:$0x1]
    %v90 = vld [vmem:[%s2 + $0x3] sm:$0x1]
    %v91 = vld [vmem:[%s2 + $0x4] sm:$0x1]
    %v92 = vld [vmem:[%s2 + $0x5] sm:$0x1]
    %v93 = vld [vmem:[%s2 + $0x6] sm:$0x1]
    %v94 = vlaneseq
    %v95 = vshrl.u32 %v94, 7
    %v96 = vsub.s32 0, %v95
    %v97 = vrot.slane %v87, %v96
    %v106 = vunpack.c.l.b16 %v31
    %v107 = vunpack.c.l.b16 %v32
    %v108 = vunpack.c.l.b16 %v33
    %v109 = vunpack.c.l.b16 %v34
    %v110 = vunpack.c.l.b16 %v35
    %v111 = vunpack.c.l.b16 %v36
    %v112 = vunpack.c.l.b16 %v37
    %v113 = vunpack.c.l.b16 %v38
    %v114 = vpack.c.b16 %v107, %v106
    %v115 = vpack.c.b16 %v109, %v108
    %v116 = vpack.c.b16 %v111, %v110
    %v117 = vpack.c.b16 %v113, %v112
    %vm122 = vcmask 523264
    %v124 = vsel %vm122, %v30, 0
    %126 = vmatprep.subr.bf16.mxu0 0
    %127 = vmatpush1.bf16.msra.mxu0 %v114
    %128 = vmatprep.subr.bf16.mxu0 0
    %129 = vmatpush1.bf16.msra.mxu0 %v115
    %130 = vmatprep.subr.bf16.mxu0 0
    %131 = vmatpush1.bf16.msra.mxu0 %v116
    %132 = vmatprep.subr.bf16.mxu0 0
    %133 = vmatpush1.bf16.msra.mxu0 %v117
    %134 = vmatprep.subr.bf16.mxu0 0
    %135 = vmatpush1.bf16.msra.mxu0 0
    %136 = vmatprep.subr.bf16.mxu0 0
    %137 = vmatpush1.bf16.msra.mxu0 0
    %138 = vmatprep.subr.bf16.mxu0 0
    %139 = vmatpush1.bf16.msra.mxu0 0
    %140 = vmatprep.subr.bf16.mxu0 0
    %141 = vmatpush1.bf16.msra.mxu0 0
    %142 = vmatprep.subr.bf16.mxu0 0
    %143 = vmatpush1.bf16.msra.mxu0 0
    %144 = vmatprep.subr.bf16.mxu0 0
    %145 = vmatpush1.bf16.msra.mxu0 0
    %146 = vmatprep.subr.bf16.mxu0 0
    %147 = vmatpush1.bf16.msra.mxu0 0
    %148 = vmatprep.subr.bf16.mxu0 0
    %149 = vmatpush1.bf16.msra.mxu0 0
    %150 = vmatprep.subr.bf16.mxu0 0
    %151 = vmatpush1.bf16.msra.mxu0 0
    %152 = vmatprep.subr.bf16.mxu0 0
    %153 = vmatpush1.bf16.msra.mxu0 0
    %154 = vmatprep.subr.bf16.mxu0 0
    %155 = vmatpush1.bf16.msra.mxu0 0
    %156 = vmatprep.subr.bf16.mxu0 0
    %157 = vmatpush1.bf16.msra.mxu0 0
    %158 = vmatprep.mubr.bf16.mxu0 0
    %159 = vmatmul.mubr.bf16.gmra.mrb[0].mxu0 %v124
    %v160 = vpop.f32.mrb[0].mxu0
    %v161 = vadd.f32 %v97, %v160
    %v162 = vpop.f32.mrb[0].mxu0
    %v163 = vpop.f32.mrb[0].mxu0
    %v164 = vpop.f32.mrb[0].mxu0
    %165 = vdwg.mxu0
    %v166 = vmax.f32 %v161, 0.0
    %v167 = vpack.c.bf16 %v166, %v166
    %v168 = vlaneseq
    %v169 = vshrl.u32 %v168, 7
    %v170 = vsub.s32 0, %v169
    %v171 = vrot.slane %v88, %v170
    %v188 = vunpack.c.l.b16 %v39
    %v189 = vunpack.c.l.b16 %v40
    %v190 = vunpack.c.l.b16 %v41
    %v191 = vunpack.c.l.b16 %v42
    %v192 = vunpack.c.l.b16 %v43
    %v193 = vunpack.c.l.b16 %v44
    %v194 = vunpack.c.l.b16 %v45
    %v195 = vunpack.c.l.b16 %v46
    %v196 = vunpack.c.l.b16 %v47
    %v197 = vunpack.c.l.b16 %v48
    %v198 = vunpack.c.l.b16 %v49
    %v199 = vunpack.c.l.b16 %v50
    %v200 = vunpack.c.l.b16 %v51
    %v201 = vunpack.c.l.b16 %v52
    %v202 = vunpack.c.l.b16 %v53
    %v203 = vunpack.c.l.b16 %v54
    %v204 = vpack.c.b16 %v189, %v188
    %v205 = vpack.c.b16 %v191, %v190
    %v206 = vpack.c.b16 %v193, %v192
    %v207 = vpack.c.b16 %v195, %v194
    %v208 = vpack.c.b16 %v197, %v196
    %v209 = vpack.c.b16 %v199, %v198
    %v210 = vpack.c.b16 %v201, %v200
    %v211 = vpack.c.b16 %v203, %v202
    %220 = vmatprep.subr.bf16.mxu0 0
    %221 = vmatpush1.bf16.msra.mxu0 %v204
    %222 = vmatprep.subr.bf16.mxu0 0
    %223 = vmatpush1.bf16.msra.mxu0 %v205
    %224 = vmatprep.subr.bf16.mxu0 0
    %225 = vmatpush1.bf16.msra.mxu0 %v206
    %226 = vmatprep.subr.bf16.mxu0 0
    %227 = vmatpush1.bf16.msra.mxu0 %v207
    %228 = vmatprep.subr.bf16.mxu0 0
    %229 = vmatpush1.bf16.msra.mxu0 %v208
    %230 = vmatprep.subr.bf16.mxu0 0
    %231 = vmatpush1.bf16.msra.mxu0 %v209
    %232 = vmatprep.subr.bf16.mxu0 0
    %233 = vmatpush1.bf16.msra.mxu0 %v210
    %234 = vmatprep.subr.bf16.mxu0 0
    %235 = vmatpush1.bf16.msra.mxu0 %v211
    %236 = vmatprep.subr.bf16.mxu0 0
    %237 = vmatpush1.bf16.msra.mxu0 0
    %238 = vmatprep.subr.bf16.mxu0 0
    %239 = vmatpush1.bf16.msra.mxu0 0
    %240 = vmatprep.subr.bf16.mxu0 0
    %241 = vmatpush1.bf16.msra.mxu0 0
    %242 = vmatprep.subr.bf16.mxu0 0
    %243 = vmatpush1.bf16.msra.mxu0 0
    %244 = vmatprep.subr.bf16.mxu0 0
    %245 = vmatpush1.bf16.msra.mxu0 0
    %246 = vmatprep.subr.bf16.mxu0 0
    %247 = vmatpush1.bf16.msra.mxu0 0
    %248 = vmatprep.subr.bf16.mxu0 0
    %249 = vmatpush1.bf16.msra.mxu0 0
    %250 = vmatprep.subr.bf16.mxu0 0
    %251 = vmatpush1.bf16.msra.mxu0 0
    %252 = vmatprep.mubr.bf16.mxu0 0
    %253 = vmatmul.mubr.bf16.gmra.mrb[0].mxu0 %v167
    %v254 = vpop.f32.mrb[0].mxu0
    %v255 = vadd.f32 %v171, %v254
    %v256 = vpop.f32.mrb[0].mxu0
    %v257 = vpop.f32.mrb[0].mxu0
    %v258 = vpop.f32.mrb[0].mxu0
    %259 = vdwg.mxu0
    %v260 = vmax.f32 %v255, 0.0
    %v261 = vpack.c.bf16 %v260, %v260
    %v262 = vlaneseq
    %v263 = vshrl.u32 %v262, 7
    %v264 = vsub.s32 0, %v263
    %v265 = vrot.slane %v89, %v264
    %v282 = vunpack.c.l.b16 %v55
    %v283 = vunpack.c.l.b16 %v56
    %v284 = vunpack.c.l.b16 %v57
    %v285 = vunpack.c.l.b16 %v58
    %v286 = vunpack.c.l.b16 %v59
    %v287 = vunpack.c.l.b16 %v60
    %v288 = vunpack.c.l.b16 %v61
    %v289 = vunpack.c.l.b16 %v62
    %v290 = vunpack.c.l.b16 %v63
    %v291 = vunpack.c.l.b16 %v64
    %v292 = vunpack.c.l.b16 %v65
    %v293 = vunpack.c.l.b16 %v66
    %v294 = vunpack.c.l.b16 %v67
    %v295 = vunpack.c.l.b16 %v68
    %v296 = vunpack.c.l.b16 %v69
    %v297 = vunpack.c.l.b16 %v70
    %v298 = vpack.c.b16 %v283, %v282
    %v299 = vpack.c.b16 %v285, %v284
    %v300 = vpack.c.b16 %v287, %v286
    %v301 = vpack.c.b16 %v289, %v288
    %v302 = vpack.c.b16 %v291, %v290
    %v303 = vpack.c.b16 %v293, %v292
    %v304 = vpack.c.b16 %v295, %v294
    %v305 = vpack.c.b16 %v297, %v296
    %314 = vmatprep.subr.bf16.mxu0 0
    %315 = vmatpush1.bf16.msra.mxu0 %v298
    %316 = vmatprep.subr.bf16.mxu0 0
    %317 = vmatpush1.bf16.msra.mxu0 %v299
    %318 = vmatprep.subr.bf16.mxu0 0
    %319 = vmatpush1.bf16.msra.mxu0 %v300
    %320 = vmatprep.subr.bf16.mxu0 0
    %321 = vmatpush1.bf16.msra.mxu0 %v301
    %322 = vmatprep.subr.bf16.mxu0 0
    %323 = vmatpush1.bf16.msra.mxu0 %v302
    %324 = vmatprep.subr.bf16.mxu0 0
    %325 = vmatpush1.bf16.msra.mxu0 %v303
    %326 = vmatprep.subr.bf16.mxu0 0
    %327 = vmatpush1.bf16.msra.mxu0 %v304
    %328 = vmatprep.subr.bf16.mxu0 0
    %329 = vmatpush1.bf16.msra.mxu0 %v305
    %330 = vmatprep.subr.bf16.mxu0 0
    %331 = vmatpush1.bf16.msra.mxu0 0
    %332 = vmatprep.subr.bf16.mxu0 0
    %333 = vmatpush1.bf16.msra.mxu0 0
    %334 = vmatprep.subr.bf16.mxu0 0
    %335 = vmatpush1.bf16.msra.mxu0 0
    %336 = vmatprep.subr.bf16.mxu0 0
    %337 = vmatpush1.bf16.msra.mxu0 0
    %338 = vmatprep.subr.bf16.mxu0 0
    %339 = vmatpush1.bf16.msra.mxu0 0
    %340 = vmatprep.subr.bf16.mxu0 0
    %341 = vmatpush1.bf16.msra.mxu0 0
    %342 = vmatprep.subr.bf16.mxu0 0
    %343 = vmatpush1.bf16.msra.mxu0 0
    %344 = vmatprep.subr.bf16.mxu0 0
    %345 = vmatpush1.bf16.msra.mxu0 0
    %346 = vmatprep.mubr.bf16.mxu0 0
    %347 = vmatmul.mubr.bf16.gmra.mrb[0].mxu0 %v261
    %v348 = vpop.f32.mrb[0].mxu0
    %v349 = vadd.f32 %v265, %v348
    %v350 = vpop.f32.mrb[0].mxu0
    %v351 = vpop.f32.mrb[0].mxu0
    %v352 = vpop.f32.mrb[0].mxu0
    %353 = vdwg.mxu0
    %v354 = vmax.f32 %v349, 0.0
    %v355 = vpack.c.bf16 %v354, %v354
    %v356 = vlaneseq
    %v357 = vshrl.u32 %v356, 7
    %v358 = vsub.s32 0, %v357
    %v359 = vrot.slane %v90, %v358
    %v376 = vunpack.c.l.b16 %v71
    %v377 = vunpack.c.l.b16 %v72
    %v378 = vunpack.c.l.b16 %v73
    %v379 = vunpack.c.l.b16 %v74
    %v380 = vunpack.c.l.b16 %v75
    %v381 = vunpack.c.l.b16 %v76
    %v382 = vunpack.c.l.b16 %v77
    %v383 = vunpack.c.l.b16 %v78
    %v384 = vunpack.c.l.b16 %v79
    %v385 = vunpack.c.l.b16 %v80
    %v386 = vunpack.c.l.b16 %v81
    %v387 = vunpack.c.l.b16 %v82
    %v388 = vunpack.c.l.b16 %v83
    %v389 = vunpack.c.l.b16 %v84
    %v390 = vunpack.c.l.b16 %v85
    %v391 = vunpack.c.l.b16 %v86
    %v392 = vpack.c.b16 %v377, %v376
    %v393 = vpack.c.b16 %v379, %v378
    %v394 = vpack.c.b16 %v381, %v380
    %v395 = vpack.c.b16 %v383, %v382
    %v396 = vpack.c.b16 %v385, %v384
    %v397 = vpack.c.b16 %v387, %v386
    %v398 = vpack.c.b16 %v389, %v388
    %v399 = vpack.c.b16 %v391, %v390
    %408 = vmatprep.subr.bf16.mxu0 0
    %409 = vmatpush1.bf16.msra.mxu0 %v392
    %410 = vmatprep.subr.bf16.mxu0 0
    %411 = vmatpush1.bf16.msra.mxu0 %v393
    %412 = vmatprep.subr.bf16.mxu0 0
    %413 = vmatpush1.bf16.msra.mxu0 %v394
    %414 = vmatprep.subr.bf16.mxu0 0
    %415 = vmatpush1.bf16.msra.mxu0 %v395
    %416 = vmatprep.subr.bf16.mxu0 0
    %417 = vmatpush1.bf16.msra.mxu0 %v396
    %418 = vmatprep.subr.bf16.mxu0 0
    %419 = vmatpush1.bf16.msra.mxu0 %v397
    %420 = vmatprep.subr.bf16.mxu0 0
    %421 = vmatpush1.bf16.msra.mxu0 %v398
    %422 = vmatprep.subr.bf16.mxu0 0
    %423 = vmatpush1.bf16.msra.mxu0 %v399
    %424 = vmatprep.subr.bf16.mxu0 0
    %425 = vmatpush1.bf16.msra.mxu0 0
    %426 = vmatprep.subr.bf16.mxu0 0
    %427 = vmatpush1.bf16.msra.mxu0 0
    %428 = vmatprep.subr.bf16.mxu0 0
    %429 = vmatpush1.bf16.msra.mxu0 0
    %430 = vmatprep.subr.bf16.mxu0 0
    %431 = vmatpush1.bf16.msra.mxu0 0
    %432 = vmatprep.subr.bf16.mxu0 0
    %433 = vmatpush1.bf16.msra.mxu0 0
    %434 = vmatprep.subr.bf16.mxu0 0
    %435 = vmatpush1.bf16.msra.mxu0 0
    %436 = vmatprep.subr.bf16.mxu0 0
    %437 = vmatpush1.bf16.msra.mxu0 0
    %438 = vmatprep.subr.bf16.mxu0 0
    %439 = vmatpush1.bf16.msra.mxu0 0
    %440 = vmatprep.mubr.bf16.mxu0 0
    %441 = vmatmul.mubr.bf16.gmra.mrb[0].mxu0 %v355
    %v442 = vpop.f32.mrb[0].mxu0
    %v443 = vadd.f32 %v359, %v442
    %v444 = vpop.f32.mrb[0].mxu0
    %v445 = vpop.f32.mrb[0].mxu0
    %v446 = vpop.f32.mrb[0].mxu0
    %447 = vdwg.mxu0
    %v448 = vmax.f32 %v443, 0.0
    %v449 = vlaneseq
    %v450 = vshrl.u32 %v449, 7
    %v451 = vsub.s32 0, %v450
    %v452 = vrot.slane %v91, %v451
    %v453 = vmul.f32 %v448, %v452
    %454 = vadd.xlane.f32.xlu0 %v453
    %v455 = vpop.xlane.xlu0 %454
    %v456 = vlaneseq
    %v457 = vshrl.u32 %v456, 7
    %v458 = vsub.s32 0, %v457
    %v459 = vrot.slane %v92, %v458
    %v460 = vmul.f32 %v448, %v459
    %461 = vadd.xlane.f32.xlu0 %v460
    %v462 = vpop.xlane.xlu0 %461
    %v463 = vlaneseq
    %v464 = vand.u32 %v463, 127
    %vm465 = vcmp.eq.s32.totalorder %v464, 0
    %v466 = vsel %vm465, %v455, %v462
    %s468 = vtos %v93
    %v469 = vstv %s468
    %v471 = vadd.f32 %v466, %v469
    %vm472 = vcmask 15360
    %473 = vst.msk [vmem:[%s3] sm:$0xff] %vm472, %v471
    // Predicated region
    $region18: #{_elo_forward.1} parent=1 // pred_check
      _
    $region19: #{_elo_forward.1} parent=1 // pred_check_branch
      %475 = sbr.rel (0) target = $region21
    $region20: #{_elo_forward.1} parent=1 // pred_region
      _
    $region21: #{_elo_forward.1} parent=1 // pred_fallthru
      _
    // Predicated region
    $region22: #{_elo_forward.1} parent=1 // pred_check
      _
    $region23: #{_elo_forward.1} parent=1 // pred_check_branch
      %477 = sbr.rel (0) target = $region25
    $region24: #{_elo_forward.1} parent=1 // pred_region
      _
    $region25: #{_elo_forward.1} parent=1 // pred_fallthru
      _
    %478 = vsyncpa [#allocation3], 1

</llo_original>
